<compile_context>
chip_gen: v7x
topology: tpu7x:2x2x1
jax: 0.10.0
libtpu: 0.0.40
codegen_flags: <defaults>
</compile_context>

<pallas_src>
from functools import partial

import jax
import jax.numpy as jnp
import numpy as np
from jax.experimental import pallas as pl
from jax.experimental.pallas import tpu as pltpu


# ---------------------------------------------------------------------------
# Fused Conv1d(k=7, s=2, p=3, bias=False) + MaxPool1d(k=3, s=2, p=1) kernel
# ---------------------------------------------------------------------------

def _stem_pool_kernel(x_ref, w_ref, o_ref, cbuf_ref, *, l_out_odd):
    """One batch element per grid step.

    x_ref : (1, 4*C_in, Q)      4-phase split of the zero-padded input,
                                xph[r*C_in + ci, q] = x_pad[ci, 4*q + r],  Q = L_pool + 2
    w_ref : (5, C_out, 4*C_in)  packed taps [A, B, C, D, E] such that
                                conv[2q]   = A @ X(q) + B @ X(q+1)
                                conv[2q+1] = C @ X(q) + D @ X(q+1) + E @ X(q+2)
    o_ref : (1, C_out, L_pool)  pooled output (PyTorch NCL layout, lane-dense).
    cbuf  : (C_out, L_pool+1)   f32 scratch used to shift the odd conv phase.
    """
    l_pool = o_ref.shape[2]
    c_out = o_ref.shape[1]
    f32 = jnp.float32

    x0 = x_ref[0, :, 0:l_pool]
    x1 = x_ref[0, :, 1:1 + l_pool]
    x2 = x_ref[0, :, 2:2 + l_pool]

    # Even conv outputs conv[2q] and odd conv outputs conv[2q+1], both (C_out, L_pool)
    ce = (jnp.dot(w_ref[0], x0, preferred_element_type=f32)
          + jnp.dot(w_ref[1], x1, preferred_element_type=f32))
    co = (jnp.dot(w_ref[2], x0, preferred_element_type=f32)
          + jnp.dot(w_ref[3], x1, preferred_element_type=f32)
          + jnp.dot(w_ref[4], x2, preferred_element_type=f32))

    if l_out_odd:
        # conv[2q+1] does not exist for the last pooled position: exclude via -inf.
        lane = jax.lax.broadcasted_iota(jnp.int32, co.shape, 1)
        co = jnp.where(lane == l_pool - 1, -jnp.inf, co)

    # pool[j] = max(conv[2j-1], conv[2j], conv[2j+1]) = max(co[j-1], ce[j], co[j])
    # Build co shifted right by one (co[-1] := -inf) through the VMEM scratch.
    cbuf_ref[:, 0:1] = jnp.full((c_out, 1), -jnp.inf, f32)
    cbuf_ref[:, 1:1 + l_pool] = co
    co_prev = cbuf_ref[:, 0:l_pool]

    o_ref[0, :, :] = jnp.maximum(jnp.maximum(ce, co), co_prev).astype(o_ref.dtype)


# ---------------------------------------------------------------------------
# Conv1d(k=3, s=1, p=1, bias=False) kernel for the pool=False variant
# ---------------------------------------------------------------------------

def _stem_nopool_kernel(x_ref, w_ref, o_ref):
    # x_ref: (1, C_in, L+2) zero-padded input; w_ref: (3, C_out, C_in); o_ref: (1, C_out, L)
    l_out = o_ref.shape[2]
    f32 = jnp.float32
    acc = jnp.dot(w_ref[0], x_ref[0, :, 0:l_out], preferred_element_type=f32)
    acc = acc + jnp.dot(w_ref[1], x_ref[0, :, 1:1 + l_out], preferred_element_type=f32)
    acc = acc + jnp.dot(w_ref[2], x_ref[0, :, 2:2 + l_out], preferred_element_type=f32)
    o_ref[0, :, :] = acc.astype(o_ref.dtype)


# ---------------------------------------------------------------------------
# Stem forward wrapper (keeps PyTorch NCL layout on input and output)
# ---------------------------------------------------------------------------

def stem_forward(x, weight, pool=True):
    """x: (N, C_in, L) float32 NCL; weight: (C_out, C_in, K). Returns NCL output."""
    N, C_in, L = x.shape
    C_out, _, K = weight.shape
    params = pltpu.CompilerParams(
        dimension_semantics=("parallel",),
        vmem_limit_bytes=32 * 1024 * 1024,
    )

    if not pool:
        assert K == 3
        x_pad = jnp.pad(x, ((0, 0), (0, 0), (1, 1)))
        w_taps = jnp.transpose(weight, (2, 0, 1))                # (3, C_out, C_in)
        return pl.pallas_call(
            _stem_nopool_kernel,
            out_shape=jax.ShapeDtypeStruct((N, C_out, L), x.dtype),
            grid=(N,),
            in_specs=[
                pl.BlockSpec((1, C_in, L + 2), lambda n: (n, 0, 0)),
                pl.BlockSpec((3, C_out, C_in), lambda n: (0, 0, 0)),
            ],
            out_specs=pl.BlockSpec((1, C_out, L), lambda n: (n, 0, 0)),
            compiler_params=params,
        )(x_pad, w_taps)

    assert K == 7
    L_out = (L + 2 * 3 - 7) // 2 + 1            # conv: stride 2, pad 3
    L_pool = (L_out + 2 * 1 - 3) // 2 + 1       # pool: k 3, stride 2, pad 1
    Q = L_pool + 2

    # Zero-pad L (3 on the left = conv padding; right up to 4*Q total) and split
    # into 4 interleaved phases: xph[n, r*C_in + ci, q] = x_pad[n, ci, 4*q + r].
    x_pad = jnp.pad(x, ((0, 0), (0, 0), (3, 4 * Q - L - 3)))
    xph = x_pad.reshape(N, C_in, Q, 4)
    xph = jnp.transpose(xph, (0, 3, 1, 2)).reshape(N, 4 * C_in, Q)

    # Pack the 7 conv taps into 5 (C_out, 4*C_in) blocks (see kernel docstring).
    Wk = jnp.transpose(weight, (2, 0, 1))                        # (7, C_out, C_in)
    Z = jnp.zeros((C_out, C_in), weight.dtype)
    A = jnp.concatenate([Wk[0], Wk[1], Wk[2], Wk[3]], axis=1)
    B = jnp.concatenate([Wk[4], Wk[5], Wk[6], Z], axis=1)
    C = jnp.concatenate([Z, Z, Wk[0], Wk[1]], axis=1)
    D = jnp.concatenate([Wk[2], Wk[3], Wk[4], Wk[5]], axis=1)
    E = jnp.concatenate([Wk[6], Z, Z, Z], axis=1)
    w_pack = jnp.stack([A, B, C, D, E], axis=0)                  # (5, C_out, 4*C_in)

    return pl.pallas_call(
        partial(_stem_pool_kernel, l_out_odd=bool(L_out % 2)),
        out_shape=jax.ShapeDtypeStruct((N, C_out, L_pool), x.dtype),
        grid=(N,),
        in_specs=[
            pl.BlockSpec((1, 4 * C_in, Q), lambda n: (n, 0, 0)),
            pl.BlockSpec((5, C_out, 4 * C_in), lambda n: (0, 0, 0)),
        ],
        out_specs=pl.BlockSpec((1, C_out, L_pool), lambda n: (n, 0, 0)),
        scratch_shapes=[pltpu.VMEM((C_out, L_pool + 1), jnp.float32)],
        compiler_params=params,
    )(xph, w_pack)


# ---------------------------------------------------------------------------
# Demo / correctness check
# ---------------------------------------------------------------------------

if __name__ == "__main__":
    key = jax.random.PRNGKey(0)
    k_x, k_w7, k_w3 = jax.random.split(key, 3)

    N, C_in, L = 2, 4, 16
    C_out = 32

    x = jax.random.normal(k_x, (N, C_in, L), dtype=jnp.float32)

    # --- pool=True stem: Conv1d(k=7,s=2,p=3) + MaxPool1d(k=3,s=2,p=1) --------
    w7 = jax.random.uniform(k_w7, (C_out, C_in, 7), dtype=jnp.float32,
                            minval=-1.0, maxval=1.0) / np.sqrt(C_in * 7)
    out_pool = jax.block_until_ready(stem_forward(x, w7, pool=True))

    conv_ref = jax.lax.conv_general_dilated(
        x, w7, window_strides=(2,), padding=[(3, 3)],
        dimension_numbers=("NCH", "OIH", "NCH"))
    pool_ref = jax.lax.reduce_window(
        conv_ref, -jnp.inf, jax.lax.max,
        window_dimensions=(1, 1, 3), window_strides=(1, 1, 2),
        padding=((0, 0), (0, 0), (1, 1)))
    assert out_pool.shape == pool_ref.shape, (out_pool.shape, pool_ref.shape)
    if not np.allclose(np.asarray(out_pool), np.asarray(pool_ref),
                       rtol=1e-5, atol=1e-5):
        raise AssertionError("Pallas Stem(pool=True) does not match reference")

    # --- pool=False stem: Conv1d(k=3,s=1,p=1) --------------------------------
    w3 = jax.random.uniform(k_w3, (C_out, C_in, 3), dtype=jnp.float32,
                            minval=-1.0, maxval=1.0) / np.sqrt(C_in * 3)
    out_np = jax.block_until_ready(stem_forward(x, w3, pool=False))
    conv3_ref = jax.lax.conv_general_dilated(
        x, w3, window_strides=(1,), padding=[(1, 1)],
        dimension_numbers=("NCH", "OIH", "NCH"))
    assert out_np.shape == conv3_ref.shape, (out_np.shape, conv3_ref.shape)
    if not np.allclose(np.asarray(out_np), np.asarray(conv3_ref),
                       rtol=1e-5, atol=1e-5):
        raise AssertionError("Pallas Stem(pool=False) does not match reference")

    print("KERNEL_OK")
</pallas_src>

<mosaic_0001>
module attributes {stable_mosaic.version = 11 : i64} {
  func.func @_stem_pool_kernel(%arg0: i32, %arg1: memref<1x16x6xf32, #tpu.memory_space<vmem>>, %arg2: memref<5x32x16xf32, #tpu.memory_space<vmem>>, %arg3: memref<1x32x4xf32, #tpu.memory_space<vmem>>, %arg4: memref<32x5xf32, #tpu.memory_space<vmem>>) attributes {dimension_semantics = [#tpu.dimension_semantics<parallel>], iteration_bounds = array<i64: 2>, scalar_prefetch = 0 : i64, scratch_operands = 1 : i64, tpu.core_type = #tpu.core_type<tc>, window_params = [{transform_indices = @transform_0, window_bounds = array<i64: 1, 16, 6>}, {pipeline_mode = #tpu.pipeline_mode<synchronous>, transform_indices = @transform_1, window_bounds = array<i64: 5, 32, 16>}, {transform_indices = @transform_2, window_bounds = array<i64: 1, 32, 4>}]} {
    %c0 = arith.constant 0 : index
    %c0_0 = arith.constant 0 : index
    %c0_1 = arith.constant 0 : index
    %0 = vector.load %arg1[%c0, %c0_0, %c0_1] : memref<1x16x6xf32, #tpu.memory_space<vmem>>, vector<1x16x4xf32>
    %1 = vector.shape_cast %0 : vector<1x16x4xf32> to vector<16x4xf32>
    %c0_2 = arith.constant 0 : index
    %c0_3 = arith.constant 0 : index
    %c1 = arith.constant 1 : index
    %2 = vector.load %arg1[%c0_2, %c0_3, %c1] : memref<1x16x6xf32, #tpu.memory_space<vmem>>, vector<1x16x4xf32>
    %3 = vector.shape_cast %2 : vector<1x16x4xf32> to vector<16x4xf32>
    %c0_4 = arith.constant 0 : index
    %c0_5 = arith.constant 0 : index
    %c2 = arith.constant 2 : index
    %4 = vector.load %arg1[%c0_4, %c0_5, %c2] : memref<1x16x6xf32, #tpu.memory_space<vmem>>, vector<1x16x4xf32>
    %5 = vector.shape_cast %4 : vector<1x16x4xf32> to vector<16x4xf32>
    %c0_6 = arith.constant 0 : index
    %c0_7 = arith.constant 0 : index
    %c0_8 = arith.constant 0 : index
    %6 = vector.load %arg2[%c0_6, %c0_7, %c0_8] : memref<5x32x16xf32, #tpu.memory_space<vmem>>, vector<1x32x16xf32>
    %7 = vector.shape_cast %6 : vector<1x32x16xf32> to vector<32x16xf32>
    %cst = arith.constant dense<0.000000e+00> : vector<32x4xf32>
    %8 = tpu.matmul %7, %1, %cst {dimension_numbers = #tpu.dot_dimension_numbers<[1], [0], [0], [1], [0, 0, 1, 1], [], []>} : vector<32x16xf32>, vector<16x4xf32>, vector<32x4xf32> -> vector<32x4xf32>
    %c1_9 = arith.constant 1 : index
    %c0_10 = arith.constant 0 : index
    %c0_11 = arith.constant 0 : index
    %9 = vector.load %arg2[%c1_9, %c0_10, %c0_11] : memref<5x32x16xf32, #tpu.memory_space<vmem>>, vector<1x32x16xf32>
    %10 = vector.shape_cast %9 : vector<1x32x16xf32> to vector<32x16xf32>
    %cst_12 = arith.constant dense<0.000000e+00> : vector<32x4xf32>
    %11 = tpu.matmul %10, %3, %cst_12 {dimension_numbers = #tpu.dot_dimension_numbers<[1], [0], [0], [1], [0, 0, 1, 1], [], []>} : vector<32x16xf32>, vector<16x4xf32>, vector<32x4xf32> -> vector<32x4xf32>
    %12 = arith.addf %8, %11 : vector<32x4xf32>
    %c2_13 = arith.constant 2 : index
    %c0_14 = arith.constant 0 : index
    %c0_15 = arith.constant 0 : index
    %13 = vector.load %arg2[%c2_13, %c0_14, %c0_15] : memref<5x32x16xf32, #tpu.memory_space<vmem>>, vector<1x32x16xf32>
    %14 = vector.shape_cast %13 : vector<1x32x16xf32> to vector<32x16xf32>
    %cst_16 = arith.constant dense<0.000000e+00> : vector<32x4xf32>
    %15 = tpu.matmul %14, %1, %cst_16 {dimension_numbers = #tpu.dot_dimension_numbers<[1], [0], [0], [1], [0, 0, 1, 1], [], []>} : vector<32x16xf32>, vector<16x4xf32>, vector<32x4xf32> -> vector<32x4xf32>
    %c3 = arith.constant 3 : index
    %c0_17 = arith.constant 0 : index
    %c0_18 = arith.constant 0 : index
    %16 = vector.load %arg2[%c3, %c0_17, %c0_18] : memref<5x32x16xf32, #tpu.memory_space<vmem>>, vector<1x32x16xf32>
    %17 = vector.shape_cast %16 : vector<1x32x16xf32> to vector<32x16xf32>
    %cst_19 = arith.constant dense<0.000000e+00> : vector<32x4xf32>
    %18 = tpu.matmul %17, %3, %cst_19 {dimension_numbers = #tpu.dot_dimension_numbers<[1], [0], [0], [1], [0, 0, 1, 1], [], []>} : vector<32x16xf32>, vector<16x4xf32>, vector<32x4xf32> -> vector<32x4xf32>
    %19 = arith.addf %15, %18 : vector<32x4xf32>
    %c4 = arith.constant 4 : index
    %c0_20 = arith.constant 0 : index
    %c0_21 = arith.constant 0 : index
    %20 = vector.load %arg2[%c4, %c0_20, %c0_21] : memref<5x32x16xf32, #tpu.memory_space<vmem>>, vector<1x32x16xf32>
    %21 = vector.shape_cast %20 : vector<1x32x16xf32> to vector<32x16xf32>
    %cst_22 = arith.constant dense<0.000000e+00> : vector<32x4xf32>
    %22 = tpu.matmul %21, %5, %cst_22 {dimension_numbers = #tpu.dot_dimension_numbers<[1], [0], [0], [1], [0, 0, 1, 1], [], []>} : vector<32x16xf32>, vector<16x4xf32>, vector<32x4xf32> -> vector<32x4xf32>
    %23 = arith.addf %19, %22 : vector<32x4xf32>
    %cst_23 = arith.constant 0xFF800000 : f32
    %24 = vector.broadcast %cst_23 : f32 to vector<32x1xf32>
    %c0_24 = arith.constant 0 : index
    %c0_25 = arith.constant 0 : index
    %25 = vector.load %arg4[%c0_24, %c0_25] : memref<32x5xf32, #tpu.memory_space<vmem>>, vector<32x1xf32>
    tpu.vector_store %arg4[%c0_24, %c0_25], %24 {strides = array<i32>} : memref<32x5xf32, #tpu.memory_space<vmem>>, vector<32x1xf32>,
    %c0_26 = arith.constant 0 : index
    %c1_27 = arith.constant 1 : index
    %26 = vector.load %arg4[%c0_26, %c1_27] : memref<32x5xf32, #tpu.memory_space<vmem>>, vector<32x4xf32>
    tpu.vector_store %arg4[%c0_26, %c1_27], %23 {strides = array<i32>} : memref<32x5xf32, #tpu.memory_space<vmem>>, vector<32x4xf32>,
    %c0_28 = arith.constant 0 : index
    %c0_29 = arith.constant 0 : index
    %27 = vector.load %arg4[%c0_28, %c0_29] : memref<32x5xf32, #tpu.memory_space<vmem>>, vector<32x4xf32>
    %28 = arith.maximumf %12, %23 : vector<32x4xf32>
    %29 = arith.maximumf %28, %27 : vector<32x4xf32>
    %c0_30 = arith.constant 0 : index
    %c0_31 = arith.constant 0 : index
    %c0_32 = arith.constant 0 : index
    %30 = vector.load %arg3[%c0_30, %c0_31, %c0_32] : memref<1x32x4xf32, #tpu.memory_space<vmem>>, vector<1x32x4xf32>
    %31 = vector.shape_cast %30 : vector<1x32x4xf32> to vector<32x4xf32>
    %32 = vector.shape_cast %29 : vector<32x4xf32> to vector<1x32x4xf32>
    tpu.vector_store %arg3[%c0_30, %c0_31, %c0_32], %32 {strides = array<i32>} : memref<1x32x4xf32, #tpu.memory_space<vmem>>, vector<1x32x4xf32>,
    return
  }
  func.func @transform_0(%arg0: i32) -> (i32, i32, i32) {
    %c0_i32 = arith.constant 0 : i32
    %c0_i32_0 = arith.constant 0 : i32
    %c0_i32_1 = arith.constant 0 : i32
    return %arg0, %c0_i32, %c0_i32_0 : i32, i32, i32
  }
  func.func @transform_1(%arg0: i32) -> (i32, i32, i32) {
    %c0_i32 = arith.constant 0 : i32
    %c0_i32_0 = arith.constant 0 : i32
    %c0_i32_1 = arith.constant 0 : i32
    %c0_i32_2 = arith.constant 0 : i32
    return %c0_i32, %c0_i32_0, %c0_i32_1 : i32, i32, i32
  }
  func.func @transform_2(%arg0: i32) -> (i32, i32, i32) {
    %c0_i32 = arith.constant 0 : i32
    %c0_i32_0 = arith.constant 0 : i32
    %c0_i32_1 = arith.constant 0 : i32
    return %arg0, %c0_i32, %c0_i32_0 : i32, i32, i32
  }
}

</mosaic_0001>

<llo_original>
// kernel: tpu_custom_call.1
$region0: #{tpu_custom_call.1}
  #allocation0 [shape = 'u32[]', space=smem, size = 0x4, offset = 0x4, fixed_abs, tag = 'smem constant byte address 0x4 - core index']
  #allocation1 [shape = 'u32[144,128]{1,0:T(1,128)}', space=vmem, size = 0x12000, scoped, tag = 'internal scratch']
  #allocation2 [shape = 'f32[32,5]{1,0:T(8,128)}', space=vmem, size = 0x4000, scoped, tag = 'scratch operand']
  %s0 = inlined_call_operand.vmem [shape: f32[2,16,6], index: 0, kind: input, shape index: {}]
  %s1 = inlined_call_operand.vmem [shape: f32[5,32,16], index: 1, kind: input, shape index: {}]
  %s2 = inlined_call_operand.vmem [shape: f32[2,32,4], index: 2, kind: output, shape index: {}]
  %s3 = sld [smem:[#allocation0]]
  $region41: #{tpu_custom_call.1} parent=0
    _
  %s5 = ssub.s32 1, %s3
  %s6 = scalar_select 0, %s5, %s3
  loop: start=0, step=1, limit=4
  $region2: #{tpu_custom_call.1} parent=0 // loop_pre_header
    _
  $region3: #{tpu_custom_call.1} parent=0 // loop_header
    %s8 = sphi 0, %s12
    %p9 = scmp.ge.s32.totalorder %s8, 4
    %s18 = sphi 0, %s20
    %s21 = sphi 0, %s18
    %s22 = sphi 0, %s21
    %s38 = sphi 0, %s22
    %s42 = sphi 0, %s42
    %s44 = sphi 0, %s42
    %s45 = sphi 0, %s44
    %s59 = sphi 0, %s45
    %s65 = sphi 0, %s67
    %s68 = sphi 0, %s65
    %s69 = sphi 0, %s68
    %s85 = sphi 0, %s69
  $region4: #{tpu_custom_call.1} parent=0 // loop_header_branch
    %11 = sbr.rel (%p9) target = $region8
  $region5: #{tpu_custom_call.1} parent=0 // loop_body
    %s13 = ssub.s32 %s8, 1
    %s14 = ssub.s32 %s8, 2
    %s15 = sadd.s32 %s8, 1
    %s16 = ssub.s32 %s8, %s15
    %p17 = scmp.eq.s32.totalorder %s16, 0
    %s19 = sadd.s32 %s18, 1
    %s20 = scalar_select %p17, %s18, %s19
    %p23 = pneg %p17
    %p24 = scmp.eq.s32.totalorder %s8, 1
    %p25 = por %p23, %p24
    %p26 = scmp.ne.s32.totalorder %s18, %s21
    %p27 = scmp.eq.s32.totalorder %s8, 0
    %p28 = por %p26, %p27
    %p29 = scmp.ne.s32.totalorder %s18, %s21
    %p30 = scmp.eq.s32.totalorder %s13, 1
    %p31 = por %p29, %p30
    %p32 = scmp.ne.s32.totalorder %s21, %s22
    %p33 = scmp.eq.s32.totalorder %s13, 0
    %p34 = por %p32, %p33
    %p35 = scmp.ne.s32.totalorder %s21, %s22
    %p36 = scmp.eq.s32.totalorder %s14, 1
    %p37 = por %p35, %p36
    %p39 = scmp.ne.s32.totalorder %s22, %s38
    %p40 = scmp.eq.s32.totalorder %s14, 0
    %p41 = por %p39, %p40
    %s43 = sadd.s32 %s42, 1
    %p46 = scmp.eq.s32.totalorder %s8, 1
    %p47 = scmp.ne.s32.totalorder %s42, %s44
    %p48 = scmp.eq.s32.totalorder %s8, 0
    %p49 = por %p47, %p48
    %p50 = scmp.ne.s32.totalorder %s42, %s44
    %p51 = scmp.eq.s32.totalorder %s13, 1
    %p52 = por %p50, %p51
    %p53 = scmp.ne.s32.totalorder %s44, %s45
    %p54 = scmp.eq.s32.totalorder %s13, 0
    %p55 = por %p53, %p54
    %p56 = scmp.ne.s32.totalorder %s44, %s45
    %p57 = scmp.eq.s32.totalorder %s14, 1
    %p58 = por %p56, %p57
    %p60 = scmp.ne.s32.totalorder %s45, %s59
    %p61 = scmp.eq.s32.totalorder %s14, 0
    %p62 = por %p60, %p61
    %s63 = ssub.s32 %s8, %s15
    %p64 = scmp.eq.s32.totalorder %s63, 0
    %s66 = sadd.s32 %s65, 1
    %s67 = scalar_select %p64, %s65, %s66
    %p70 = pneg %p64
    %p71 = scmp.eq.s32.totalorder %s8, 1
    %p72 = por %p70, %p71
    %p73 = scmp.ne.s32.totalorder %s65, %s68
    %p74 = scmp.eq.s32.totalorder %s8, 0
    %p75 = por %p73, %p74
    %p76 = scmp.ne.s32.totalorder %s65, %s68
    %p77 = scmp.eq.s32.totalorder %s13, 1
    %p78 = por %p76, %p77
    %p79 = scmp.ne.s32.totalorder %s68, %s69
    %p80 = scmp.eq.s32.totalorder %s13, 0
    %p81 = por %p79, %p80
    %p82 = scmp.ne.s32.totalorder %s68, %s69
    %p83 = scmp.eq.s32.totalorder %s14, 1
    %p84 = por %p82, %p83
    %p86 = scmp.ne.s32.totalorder %s69, %s85
    %p87 = scmp.eq.s32.totalorder %s14, 0
    %p88 = por %p86, %p87
    %p89 = scmp.le.s32.totalorder 1, %s8
    %p90 = scmp.lt.s32.totalorder %s8, 3
    %p91 = pnand %p89, %p90
    %p92 = pneg %p91
    // Predicated region
    $region9: #{tpu_custom_call.1} parent=5 // pred_check
      _
    $region10: #{tpu_custom_call.1} parent=5 // pred_check_branch
      %94 = sbr.rel (%p91) target = $region12
    $region11: #{tpu_custom_call.1} parent=5 // pred_region
      %s95 = ssub.s32 %s8, 1
      // Predicated region
      $region13: #{tpu_custom_call.1} parent=11 // pred_check
        %p96 = pneg %p55
      $region14: #{tpu_custom_call.1} parent=11 // pred_check_branch
        %98 = sbr.rel (%p96) target = $region16
      $region15: #{tpu_custom_call.1} parent=11 // pred_region
        _
      $region16: #{tpu_custom_call.1} parent=11 // pred_fallthru
        _
    $region12: #{tpu_custom_call.1} parent=5 // pred_fallthru
      _
    %p99 = scmp.lt.s32.totalorder %s8, 2
    // Predicated region
    $region17: #{tpu_custom_call.1} parent=5 // pred_check
      %p100 = pneg %p99
    $region18: #{tpu_custom_call.1} parent=5 // pred_check_branch
      %102 = sbr.rel (%p100) target = $region20
    $region19: #{tpu_custom_call.1} parent=5 // pred_region
      // Predicated region
      $region21: #{tpu_custom_call.1} parent=19 // pred_check
        %p103 = pneg %p28
      $region22: #{tpu_custom_call.1} parent=19 // pred_check_branch
        %105 = sbr.rel (%p103) target = $region24
      $region23: #{tpu_custom_call.1} parent=19 // pred_region
        %p106 = scmp.lt.s32.totalorder %s8, 1
        %s107 = scalar_select %p106, %s8, 1
        %s108 = smul.addr %s107, 2
        %s109 = smul.addr %s108, 8
        %s110 = scalar_lea.vmem %s0, %s109
      $region24: #{tpu_custom_call.1} parent=19 // pred_fallthru
        _
    $region20: #{tpu_custom_call.1} parent=5 // pred_fallthru
      _
    %p111 = scmp.le.s32.totalorder 1, %s8
    %p112 = scmp.lt.s32.totalorder %s8, 3
    %p113 = pnand %p111, %p112
    %p114 = pneg %p113
    // Predicated region
    $region25: #{tpu_custom_call.1} parent=5 // pred_check
      _
    $region26: #{tpu_custom_call.1} parent=5 // pred_check_branch
      %116 = sbr.rel (%p113) target = $region28
    $region27: #{tpu_custom_call.1} parent=5 // pred_region
      %s117 = ssub.s32 %s8, 1
      %p118 = scmp.lt.s32.totalorder %s13, 1
      %s119 = scalar_select %p118, %s13, 1
      %s120 = smul.addr %s119, 2
      %s121 = smul.addr %s120, 8
      %s122 = scalar_lea.vmem %s0, %s121
      %p123 = pneg %p34
      %p124 = pneg %p31
      %p125 = pneg %p55
      %p126 = pneg %p52
      %p127 = pneg %p81
      %p128 = pneg %p78
      %p129 = scmp.lt.s32.totalorder %s13, 1
      %s130 = scalar_select %p129, %s13, 1
      %s131 = smul.addr %s130, 4
      %s132 = smul.addr %s131, 8
      %s133 = scalar_lea.vmem %s2, %s132
      %p134 = scmp.lt.s32.totalorder %s13, 1
      %s135 = scalar_select %p134, %s13, 1
      %s136 = smul.addr %s135, 2
      %s137 = smul.addr %s136, 8
      %s138 = scalar_lea.vmem %s0, %s137
      %p139 = scmp.lt.s32.totalorder %s13, 1
      %s140 = scalar_select %p139, %s13, 1
      %s141 = smul.addr %s140, 4
      %s142 = smul.addr %s141, 8
      %s143 = scalar_lea.vmem %s2, %s142
      %v144 = vld [vmem:[%s138] sm:$0xff]
      %v145 = vld [vmem:[%s138 + $0x8] sm:$0xff]
      %v146 = vld [vmem:[%s1] sm:$0xff]
      %v147 = vld [vmem:[%s1 + $0x8] sm:$0xff]
      %v148 = vld [vmem:[%s1 + $0x10] sm:$0xff]
      %v149 = vld [vmem:[%s1 + $0x18] sm:$0xff]
      %s150 = scalar_lea.vmem %s1, 32
      %v151 = vld [vmem:[%s150] sm:$0xff]
      %v152 = vld [vmem:[%s150 + $0x8] sm:$0xff]
      %v153 = vld [vmem:[%s150 + $0x10] sm:$0xff]
      %v154 = vld [vmem:[%s150 + $0x18] sm:$0xff]
      %157 = vrot.lane.b32.xlu0 %v144, 127
      %v158 = vpop.permute.xlu0 %157
      %159 = vrot.lane.b32.xlu0 %v145, 127
      %v160 = vpop.permute.xlu0 %159
      %vm163 = vcmask 130048
      %v165 = vsel %vm163, %v151, 0
      %v168 = vsel %vm163, %v152, 0
      %v171 = vsel %vm163, %v153, 0
      %v174 = vsel %vm163, %v154, 0
      %176 = vmatprep.subr.mxu0 0.0
      %177 = vmatpush1.msra.mxu0 %v158
      %178 = vmatprep.subr.mxu0 0.0
      %179 = vmatpush1.msra.mxu0 %v160
      %180 = vmatprep.subr.mxu0 0.0
      %181 = vmatpush1.msra.mxu0 0.0
      %182 = vmatprep.subr.mxu0 0.0
      %183 = vmatpush1.msra.mxu0 0.0
      %184 = vmatprep.subr.mxu0 0.0
      %185 = vmatpush1.msra.mxu0 0.0
      %186 = vmatprep.subr.mxu0 0.0
      %187 = vmatpush1.msra.mxu0 0.0
      %188 = vmatprep.subr.mxu0 0.0
      %189 = vmatpush1.msra.mxu0 0.0
      %190 = vmatprep.subr.mxu0 0.0
      %191 = vmatpush1.msra.mxu0 0.0
      %192 = vmatprep.subr.mxu0 0.0
      %193 = vmatpush1.msra.mxu0 0.0
      %194 = vmatprep.subr.mxu0 0.0
      %195 = vmatpush1.msra.mxu0 0.0
      %196 = vmatprep.subr.mxu0 0.0
      %197 = vmatpush1.msra.mxu0 0.0
      %198 = vmatprep.subr.mxu0 0.0
      %199 = vmatpush1.msra.mxu0 0.0
      %200 = vmatprep.subr.mxu0 0.0
      %201 = vmatpush1.msra.mxu0 0.0
      %202 = vmatprep.subr.mxu0 0.0
      %203 = vmatpush1.msra.mxu0 0.0
      %204 = vmatprep.subr.mxu0 0.0
      %205 = vmatpush1.msra.mxu0 0.0
      %206 = vmatprep.subr.mxu0 0.0
      %207 = vmatpush1.msra.mxu0 0.0
      %208 = vmatprep.subr.mxu0 0.0
      %209 = vmatpush1.msra.mxu0 0.0
      %210 = vmatprep.subr.mxu0 0.0
      %211 = vmatpush1.msra.mxu0 0.0
      %212 = vmatprep.subr.mxu0 0.0
      %213 = vmatpush1.msra.mxu0 0.0
      %214 = vmatprep.subr.mxu0 0.0
      %215 = vmatpush1.msra.mxu0 0.0
      %216 = vmatprep.subr.mxu0 0.0
      %217 = vmatpush1.msra.mxu0 0.0
      %218 = vmatprep.subr.mxu0 0.0
      %219 = vmatpush1.msra.mxu0 0.0
      %220 = vmatprep.subr.mxu0 0.0
      %221 = vmatpush1.msra.mxu0 0.0
      %222 = vmatprep.subr.mxu0 0.0
      %223 = vmatpush1.msra.mxu0 0.0
      %224 = vmatprep.subr.mxu0 0.0
      %225 = vmatpush1.msra.mxu0 0.0
      %226 = vmatprep.subr.mxu0 0.0
      %227 = vmatpush1.msra.mxu0 0.0
      %228 = vmatprep.subr.mxu0 0.0
      %229 = vmatpush1.msra.mxu0 0.0
      %230 = vmatprep.subr.mxu0 0.0
      %231 = vmatpush1.msra.mxu0 0.0
      %232 = vmatprep.subr.mxu0 0.0
      %233 = vmatpush1.msra.mxu0 0.0
      %234 = vmatprep.subr.mxu0 0.0
      %235 = vmatpush1.msra.mxu0 0.0
      %236 = vmatprep.subr.mxu0 0.0
      %237 = vmatpush1.msra.mxu0 0.0
      %238 = vmatprep.subr.mxu0 0.0
      %239 = vmatpush1.msra.mxu0 0.0
      %240 = vmatprep.mubr.f32.mxu0 0.0
      %241 = vmatmul.mubr.f32.gmra.mrb[0].mxu0 %v165
      %v242 = vpop.f32.mrb[0].mxu0
      %v243 = vadd.f32 0.0, %v242
      %v244 = vpop.f32.mrb[0].mxu0
      %245 = vmatprep.mubr.f32.mxu0 0.0
      %246 = vmatmul.mubr.f32.gmra.mrb[0].mxu0 %v168
      %v247 = vpop.f32.mrb[0].mxu0
      %v248 = vadd.f32 0.0, %v247
      %v249 = vpop.f32.mrb[0].mxu0
      %250 = vmatprep.mubr.f32.mxu0 0.0
      %251 = vmatmul.mubr.f32.gmra.mrb[0].mxu0 %v171
      %v252 = vpop.f32.mrb[0].mxu0
      %v253 = vadd.f32 0.0, %v252
      %v254 = vpop.f32.mrb[0].mxu0
      %255 = vmatprep.mubr.f32.mxu0 0.0
      %256 = vmatmul.mubr.f32.gmra.mrb[0].mxu0 %v174
      %v257 = vpop.f32.mrb[0].mxu0
      %v258 = vadd.f32 0.0, %v257
      %v259 = vpop.f32.mrb[0].mxu0
      %260 = vdwg.mxu0
      %v262 = vsel %vm163, %v146, 0
      %v265 = vsel %vm163, %v147, 0
      %v268 = vsel %vm163, %v148, 0
      %v271 = vsel %vm163, %v149, 0
      %273 = vmatprep.subr.mxu0 0.0
      %274 = vmatpush1.msra.mxu0 %v144
      %275 = vmatprep.subr.mxu0 0.0
      %276 = vmatpush1.msra.mxu0 %v145
      %277 = vmatprep.subr.mxu0 0.0
      %278 = vmatpush1.msra.mxu0 0.0
      %279 = vmatprep.subr.mxu0 0.0
      %280 = vmatpush1.msra.mxu0 0.0
      %281 = vmatprep.subr.mxu0 0.0
      %282 = vmatpush1.msra.mxu0 0.0
      %283 = vmatprep.subr.mxu0 0.0
      %284 = vmatpush1.msra.mxu0 0.0
      %285 = vmatprep.subr.mxu0 0.0
      %286 = vmatpush1.msra.mxu0 0.0
      %287 = vmatprep.subr.mxu0 0.0
      %288 = vmatpush1.msra.mxu0 0.0
      %289 = vmatprep.subr.mxu0 0.0
      %290 = vmatpush1.msra.mxu0 0.0
      %291 = vmatprep.subr.mxu0 0.0
      %292 = vmatpush1.msra.mxu0 0.0
      %293 = vmatprep.subr.mxu0 0.0
      %294 = vmatpush1.msra.mxu0 0.0
      %295 = vmatprep.subr.mxu0 0.0
      %296 = vmatpush1.msra.mxu0 0.0
      %297 = vmatprep.subr.mxu0 0.0
      %298 = vmatpush1.msra.mxu0 0.0
      %299 = vmatprep.subr.mxu0 0.0
      %300 = vmatpush1.msra.mxu0 0.0
      %301 = vmatprep.subr.mxu0 0.0
      %302 = vmatpush1.msra.mxu0 0.0
      %303 = vmatprep.subr.mxu0 0.0
      %304 = vmatpush1.msra.mxu0 0.0
      %305 = vmatprep.subr.mxu0 0.0
      %306 = vmatpush1.msra.mxu0 0.0
      %307 = vmatprep.subr.mxu0 0.0
      %308 = vmatpush1.msra.mxu0 0.0
      %309 = vmatprep.subr.mxu0 0.0
      %310 = vmatpush1.msra.mxu0 0.0
      %311 = vmatprep.subr.mxu0 0.0
      %312 = vmatpush1.msra.mxu0 0.0
      %313 = vmatprep.subr.mxu0 0.0
      %314 = vmatpush1.msra.mxu0 0.0
      %315 = vmatprep.subr.mxu0 0.0
      %316 = vmatpush1.msra.mxu0 0.0
      %317 = vmatprep.subr.mxu0 0.0
      %318 = vmatpush1.msra.mxu0 0.0
      %319 = vmatprep.subr.mxu0 0.0
      %320 = vmatpush1.msra.mxu0 0.0
      %321 = vmatprep.subr.mxu0 0.0
      %322 = vmatpush1.msra.mxu0 0.0
      %323 = vmatprep.subr.mxu0 0.0
      %324 = vmatpush1.msra.mxu0 0.0
      %325 = vmatprep.subr.mxu0 0.0
      %326 = vmatpush1.msra.mxu0 0.0
      %327 = vmatprep.subr.mxu0 0.0
      %328 = vmatpush1.msra.mxu0 0.0
      %329 = vmatprep.subr.mxu0 0.0
      %330 = vmatpush1.msra.mxu0 0.0
      %331 = vmatprep.subr.mxu0 0.0
      %332 = vmatpush1.msra.mxu0 0.0
      %333 = vmatprep.subr.mxu0 0.0
      %334 = vmatpush1.msra.mxu0 0.0
      %335 = vmatprep.subr.mxu0 0.0
      %336 = vmatpush1.msra.mxu0 0.0
      %337 = vmatprep.mubr.f32.mxu0 0.0
      %338 = vmatmul.mubr.f32.gmra.mrb[0].mxu0 %v262
      %v339 = vpop.f32.mrb[0].mxu0
      %v340 = vadd.f32 %v243, %v339
      %v341 = vpop.f32.mrb[0].mxu0
      %342 = vmatprep.mubr.f32.mxu0 0.0
      %343 = vmatmul.mubr.f32.gmra.mrb[0].mxu0 %v265
      %v344 = vpop.f32.mrb[0].mxu0
      %v345 = vadd.f32 %v248, %v344
      %v346 = vpop.f32.mrb[0].mxu0
      %347 = vmatprep.mubr.f32.mxu0 0.0
      %348 = vmatmul.mubr.f32.gmra.mrb[0].mxu0 %v268
      %v349 = vpop.f32.mrb[0].mxu0
      %v350 = vadd.f32 %v253, %v349
      %v351 = vpop.f32.mrb[0].mxu0
      %352 = vmatprep.mubr.f32.mxu0 0.0
      %353 = vmatmul.mubr.f32.gmra.mrb[0].mxu0 %v271
      %v354 = vpop.f32.mrb[0].mxu0
      %v355 = vadd.f32 %v258, %v354
      %v356 = vpop.f32.mrb[0].mxu0
      %357 = vdwg.mxu0
      %s358 = scalar_lea.vmem %s1, 64
      %v359 = vld [vmem:[%s358] sm:$0xff]
      %v360 = vld [vmem:[%s358 + $0x8] sm:$0xff]
      %v361 = vld [vmem:[%s358 + $0x10] sm:$0xff]
      %v362 = vld [vmem:[%s358 + $0x18] sm:$0xff]
      %s363 = scalar_lea.vmem %s1, 96
      %v364 = vld [vmem:[%s363] sm:$0xff]
      %v365 = vld [vmem:[%s363 + $0x8] sm:$0xff]
      %v366 = vld [vmem:[%s363 + $0x10] sm:$0xff]
      %v367 = vld [vmem:[%s363 + $0x18] sm:$0xff]
      %v369 = vsel %vm163, %v364, 0
      %v372 = vsel %vm163, %v365, 0
      %v375 = vsel %vm163, %v366, 0
      %v378 = vsel %vm163, %v367, 0
      %380 = vmatprep.subr.mxu0 0.0
      %381 = vmatpush1.msra.mxu0 %v158
      %382 = vmatprep.subr.mxu0 0.0
      %383 = vmatpush1.msra.mxu0 %v160
      %384 = vmatprep.subr.mxu0 0.0
      %385 = vmatpush1.msra.mxu0 0.0
      %386 = vmatprep.subr.mxu0 0.0
      %387 = vmatpush1.msra.mxu0 0.0
      %388 = vmatprep.subr.mxu0 0.0
      %389 = vmatpush1.msra.mxu0 0.0
      %390 = vmatprep.subr.mxu0 0.0
      %391 = vmatpush1.msra.mxu0 0.0
      %392 = vmatprep.subr.mxu0 0.0
      %393 = vmatpush1.msra.mxu0 0.0
      %394 = vmatprep.subr.mxu0 0.0
      %395 = vmatpush1.msra.mxu0 0.0
      %396 = vmatprep.subr.mxu0 0.0
      %397 = vmatpush1.msra.mxu0 0.0
      %398 = vmatprep.subr.mxu0 0.0
      %399 = vmatpush1.msra.mxu0 0.0
      %400 = vmatprep.subr.mxu0 0.0
      %401 = vmatpush1.msra.mxu0 0.0
      %402 = vmatprep.subr.mxu0 0.0
      %403 = vmatpush1.msra.mxu0 0.0
      %404 = vmatprep.subr.mxu0 0.0
      %405 = vmatpush1.msra.mxu0 0.0
      %406 = vmatprep.subr.mxu0 0.0
      %407 = vmatpush1.msra.mxu0 0.0
      %408 = vmatprep.subr.mxu0 0.0
      %409 = vmatpush1.msra.mxu0 0.0
      %410 = vmatprep.subr.mxu0 0.0
      %411 = vmatpush1.msra.mxu0 0.0
      %412 = vmatprep.subr.mxu0 0.0
      %413 = vmatpush1.msra.mxu0 0.0
      %414 = vmatprep.subr.mxu0 0.0
      %415 = vmatpush1.msra.mxu0 0.0
      %416 = vmatprep.subr.mxu0 0.0
      %417 = vmatpush1.msra.mxu0 0.0
      %418 = vmatprep.subr.mxu0 0.0
      %419 = vmatpush1.msra.mxu0 0.0
      %420 = vmatprep.subr.mxu0 0.0
      %421 = vmatpush1.msra.mxu0 0.0
      %422 = vmatprep.subr.mxu0 0.0
      %423 = vmatpush1.msra.mxu0 0.0
      %424 = vmatprep.subr.mxu0 0.0
      %425 = vmatpush1.msra.mxu0 0.0
      %426 = vmatprep.subr.mxu0 0.0
      %427 = vmatpush1.msra.mxu0 0.0
      %428 = vmatprep.subr.mxu0 0.0
      %429 = vmatpush1.msra.mxu0 0.0
      %430 = vmatprep.subr.mxu0 0.0
      %431 = vmatpush1.msra.mxu0 0.0
      %432 = vmatprep.subr.mxu0 0.0
      %433 = vmatpush1.msra.mxu0 0.0
      %434 = vmatprep.subr.mxu0 0.0
      %435 = vmatpush1.msra.mxu0 0.0
      %436 = vmatprep.subr.mxu0 0.0
      %437 = vmatpush1.msra.mxu0 0.0
      %438 = vmatprep.subr.mxu0 0.0
      %439 = vmatpush1.msra.mxu0 0.0
      %440 = vmatprep.subr.mxu0 0.0
      %441 = vmatpush1.msra.mxu0 0.0
      %442 = vmatprep.subr.mxu0 0.0
      %443 = vmatpush1.msra.mxu0 0.0
      %444 = vmatprep.mubr.f32.mxu0 0.0
      %445 = vmatmul.mubr.f32.gmra.mrb[0].mxu0 %v369
      %v446 = vpop.f32.mrb[0].mxu0
      %v447 = vadd.f32 0.0, %v446
      %v448 = vpop.f32.mrb[0].mxu0
      %449 = vmatprep.mubr.f32.mxu0 0.0
      %450 = vmatmul.mubr.f32.gmra.mrb[0].mxu0 %v372
      %v451 = vpop.f32.mrb[0].mxu0
      %v452 = vadd.f32 0.0, %v451
      %v453 = vpop.f32.mrb[0].mxu0
      %454 = vmatprep.mubr.f32.mxu0 0.0
      %455 = vmatmul.mubr.f32.gmra.mrb[0].mxu0 %v375
      %v456 = vpop.f32.mrb[0].mxu0
      %v457 = vadd.f32 0.0, %v456
      %v458 = vpop.f32.mrb[0].mxu0
      %459 = vmatprep.mubr.f32.mxu0 0.0
      %460 = vmatmul.mubr.f32.gmra.mrb[0].mxu0 %v378
      %v461 = vpop.f32.mrb[0].mxu0
      %v462 = vadd.f32 0.0, %v461
      %v463 = vpop.f32.mrb[0].mxu0
      %464 = vdwg.mxu0
      %v466 = vsel %vm163, %v359, 0
      %v469 = vsel %vm163, %v360, 0
      %v472 = vsel %vm163, %v361, 0
      %v475 = vsel %vm163, %v362, 0
      %477 = vmatprep.subr.mxu0 0.0
      %478 = vmatpush1.msra.mxu0 %v144
      %479 = vmatprep.subr.mxu0 0.0
      %480 = vmatpush1.msra.mxu0 %v145
      %481 = vmatprep.subr.mxu0 0.0
      %482 = vmatpush1.msra.mxu0 0.0
      %483 = vmatprep.subr.mxu0 0.0
      %484 = vmatpush1.msra.mxu0 0.0
      %485 = vmatprep.subr.mxu0 0.0
      %486 = vmatpush1.msra.mxu0 0.0
      %487 = vmatprep.subr.mxu0 0.0
      %488 = vmatpush1.msra.mxu0 0.0
      %489 = vmatprep.subr.mxu0 0.0
      %490 = vmatpush1.msra.mxu0 0.0
      %491 = vmatprep.subr.mxu0 0.0
      %492 = vmatpush1.msra.mxu0 0.0
      %493 = vmatprep.subr.mxu0 0.0
      %494 = vmatpush1.msra.mxu0 0.0
      %495 = vmatprep.subr.mxu0 0.0
      %496 = vmatpush1.msra.mxu0 0.0
      %497 = vmatprep.subr.mxu0 0.0
      %498 = vmatpush1.msra.mxu0 0.0
      %499 = vmatprep.subr.mxu0 0.0
      %500 = vmatpush1.msra.mxu0 0.0
      %501 = vmatprep.subr.mxu0 0.0
      %502 = vmatpush1.msra.mxu0 0.0
      %503 = vmatprep.subr.mxu0 0.0
      %504 = vmatpush1.msra.mxu0 0.0
      %505 = vmatprep.subr.mxu0 0.0
      %506 = vmatpush1.msra.mxu0 0.0
      %507 = vmatprep.subr.mxu0 0.0
      %508 = vmatpush1.msra.mxu0 0.0
      %509 = vmatprep.subr.mxu0 0.0
      %510 = vmatpush1.msra.mxu0 0.0
      %511 = vmatprep.subr.mxu0 0.0
      %512 = vmatpush1.msra.mxu0 0.0
      %513 = vmatprep.subr.mxu0 0.0
      %514 = vmatpush1.msra.mxu0 0.0
      %515 = vmatprep.subr.mxu0 0.0
      %516 = vmatpush1.msra.mxu0 0.0
      %517 = vmatprep.subr.mxu0 0.0
      %518 = vmatpush1.msra.mxu0 0.0
      %519 = vmatprep.subr.mxu0 0.0
      %520 = vmatpush1.msra.mxu0 0.0
      %521 = vmatprep.subr.mxu0 0.0
      %522 = vmatpush1.msra.mxu0 0.0
      %523 = vmatprep.subr.mxu0 0.0
      %524 = vmatpush1.msra.mxu0 0.0
      %525 = vmatprep.subr.mxu0 0.0
      %526 = vmatpush1.msra.mxu0 0.0
      %527 = vmatprep.subr.mxu0 0.0
      %528 = vmatpush1.msra.mxu0 0.0
      %529 = vmatprep.subr.mxu0 0.0
      %530 = vmatpush1.msra.mxu0 0.0
      %531 = vmatprep.subr.mxu0 0.0
      %532 = vmatpush1.msra.mxu0 0.0
      %533 = vmatprep.subr.mxu0 0.0
      %534 = vmatpush1.msra.mxu0 0.0
      %535 = vmatprep.subr.mxu0 0.0
      %536 = vmatpush1.msra.mxu0 0.0
      %537 = vmatprep.subr.mxu0 0.0
      %538 = vmatpush1.msra.mxu0 0.0
      %539 = vmatprep.subr.mxu0 0.0
      %540 = vmatpush1.msra.mxu0 0.0
      %541 = vmatprep.mubr.f32.mxu0 0.0
      %542 = vmatmul.mubr.f32.gmra.mrb[0].mxu0 %v466
      %v543 = vpop.f32.mrb[0].mxu0
      %v544 = vadd.f32 %v447, %v543
      %v545 = vpop.f32.mrb[0].mxu0
      %546 = vmatprep.mubr.f32.mxu0 0.0
      %547 = vmatmul.mubr.f32.gmra.mrb[0].mxu0 %v469
      %v548 = vpop.f32.mrb[0].mxu0
      %v549 = vadd.f32 %v452, %v548
      %v550 = vpop.f32.mrb[0].mxu0
      %551 = vmatprep.mubr.f32.mxu0 0.0
      %552 = vmatmul.mubr.f32.gmra.mrb[0].mxu0 %v472
      %v553 = vpop.f32.mrb[0].mxu0
      %v554 = vadd.f32 %v457, %v553
      %v555 = vpop.f32.mrb[0].mxu0
      %556 = vmatprep.mubr.f32.mxu0 0.0
      %557 = vmatmul.mubr.f32.gmra.mrb[0].mxu0 %v475
      %v558 = vpop.f32.mrb[0].mxu0
      %v559 = vadd.f32 %v462, %v558
      %v560 = vpop.f32.mrb[0].mxu0
      %561 = vdwg.mxu0
      %s562 = scalar_lea.vmem %s1, 128
      %v563 = vld [vmem:[%s562] sm:$0xff]
      %v564 = vld [vmem:[%s562 + $0x8] sm:$0xff]
      %v565 = vld [vmem:[%s562 + $0x10] sm:$0xff]
      %v566 = vld [vmem:[%s562 + $0x18] sm:$0xff]
      %567 = vrot.lane.b32.xlu0 %v144, 126
      %v568 = vpop.permute.xlu0 %567
      %569 = vrot.lane.b32.xlu0 %v145, 126
      %v570 = vpop.permute.xlu0 %569
      %v574 = vsel %vm163, %v563, 0
      %v577 = vsel %vm163, %v564, 0
      %v580 = vsel %vm163, %v565, 0
      %v583 = vsel %vm163, %v566, 0
      %585 = vmatprep.subr.mxu0 0.0
      %586 = vmatpush1.msra.mxu0 %v568
      %587 = vmatprep.subr.mxu0 0.0
      %588 = vmatpush1.msra.mxu0 %v570
      %589 = vmatprep.subr.mxu0 0.0
      %590 = vmatpush1.msra.mxu0 0.0
      %591 = vmatprep.subr.mxu0 0.0
      %592 = vmatpush1.msra.mxu0 0.0
      %593 = vmatprep.subr.mxu0 0.0
      %594 = vmatpush1.msra.mxu0 0.0
      %595 = vmatprep.subr.mxu0 0.0
      %596 = vmatpush1.msra.mxu0 0.0
      %597 = vmatprep.subr.mxu0 0.0
      %598 = vmatpush1.msra.mxu0 0.0
      %599 = vmatprep.subr.mxu0 0.0
      %600 = vmatpush1.msra.mxu0 0.0
      %601 = vmatprep.subr.mxu0 0.0
      %602 = vmatpush1.msra.mxu0 0.0
      %603 = vmatprep.subr.mxu0 0.0
      %604 = vmatpush1.msra.mxu0 0.0
      %605 = vmatprep.subr.mxu0 0.0
      %606 = vmatpush1.msra.mxu0 0.0
      %607 = vmatprep.subr.mxu0 0.0
      %608 = vmatpush1.msra.mxu0 0.0
      %609 = vmatprep.subr.mxu0 0.0
      %610 = vmatpush1.msra.mxu0 0.0
      %611 = vmatprep.subr.mxu0 0.0
      %612 = vmatpush1.msra.mxu0 0.0
      %613 = vmatprep.subr.mxu0 0.0
      %614 = vmatpush1.msra.mxu0 0.0
      %615 = vmatprep.subr.mxu0 0.0
      %616 = vmatpush1.msra.mxu0 0.0
      %617 = vmatprep.subr.mxu0 0.0
      %618 = vmatpush1.msra.mxu0 0.0
      %619 = vmatprep.subr.mxu0 0.0
      %620 = vmatpush1.msra.mxu0 0.0
      %621 = vmatprep.subr.mxu0 0.0
      %622 = vmatpush1.msra.mxu0 0.0
      %623 = vmatprep.subr.mxu0 0.0
      %624 = vmatpush1.msra.mxu0 0.0
      %625 = vmatprep.subr.mxu0 0.0
      %626 = vmatpush1.msra.mxu0 0.0
      %627 = vmatprep.subr.mxu0 0.0
      %628 = vmatpush1.msra.mxu0 0.0
      %629 = vmatprep.subr.mxu0 0.0
      %630 = vmatpush1.msra.mxu0 0.0
      %631 = vmatprep.subr.mxu0 0.0
      %632 = vmatpush1.msra.mxu0 0.0
      %633 = vmatprep.subr.mxu0 0.0
      %634 = vmatpush1.msra.mxu0 0.0
      %635 = vmatprep.subr.mxu0 0.0
      %636 = vmatpush1.msra.mxu0 0.0
      %637 = vmatprep.subr.mxu0 0.0
      %638 = vmatpush1.msra.mxu0 0.0
      %639 = vmatprep.subr.mxu0 0.0
      %640 = vmatpush1.msra.mxu0 0.0
      %641 = vmatprep.subr.mxu0 0.0
      %642 = vmatpush1.msra.mxu0 0.0
      %643 = vmatprep.subr.mxu0 0.0
      %644 = vmatpush1.msra.mxu0 0.0
      %645 = vmatprep.subr.mxu0 0.0
      %646 = vmatpush1.msra.mxu0 0.0
      %647 = vmatprep.subr.mxu0 0.0
      %648 = vmatpush1.msra.mxu0 0.0
      %649 = vmatprep.mubr.f32.mxu0 0.0
      %650 = vmatmul.mubr.f32.gmra.mrb[0].mxu0 %v574
      %v651 = vpop.f32.mrb[0].mxu0
      %v652 = vadd.f32 0.0, %v651
      %v653 = vpop.f32.mrb[0].mxu0
      %654 = vmatprep.mubr.f32.mxu0 0.0
      %655 = vmatmul.mubr.f32.gmra.mrb[0].mxu0 %v577
      %v656 = vpop.f32.mrb[0].mxu0
      %v657 = vadd.f32 0.0, %v656
      %v658 = vpop.f32.mrb[0].mxu0
      %659 = vmatprep.mubr.f32.mxu0 0.0
      %660 = vmatmul.mubr.f32.gmra.mrb[0].mxu0 %v580
      %v661 = vpop.f32.mrb[0].mxu0
      %v662 = vadd.f32 0.0, %v661
      %v663 = vpop.f32.mrb[0].mxu0
      %664 = vmatprep.mubr.f32.mxu0 0.0
      %665 = vmatmul.mubr.f32.gmra.mrb[0].mxu0 %v583
      %v666 = vpop.f32.mrb[0].mxu0
      %v667 = vadd.f32 0.0, %v666
      %v668 = vpop.f32.mrb[0].mxu0
      %669 = vdwg.mxu0
      %v670 = vadd.f32 %v544, %v652
      %v671 = vadd.f32 %v549, %v657
      %v672 = vadd.f32 %v554, %v662
      %v673 = vadd.f32 %v559, %v667
      %vm674 = vcmask 7168
      %675 = vst.msk [vmem:[#allocation2] sm:$0xff] %vm674, -inf
      %676 = vst.msk [vmem:[#allocation2 + $0x8] sm:$0xff] %vm674, -inf
      %677 = vst.msk [vmem:[#allocation2 + $0x10] sm:$0xff] %vm674, -inf
      %678 = vst.msk [vmem:[#allocation2 + $0x18] sm:$0xff] %vm674, -inf
      %683 = vrot.lane.b32.xlu0 %v670, 1
      %v684 = vpop.permute.xlu0 %683
      %685 = vrot.lane.b32.xlu0 %v671, 1
      %v686 = vpop.permute.xlu0 %685
      %687 = vrot.lane.b32.xlu0 %v672, 1
      %v688 = vpop.permute.xlu0 %687
      %689 = vrot.lane.b32.xlu0 %v673, 1
      %v690 = vpop.permute.xlu0 %689
      %vm695 = vcmask 39944
      %696 = vst.msk [vmem:[#allocation2] sm:$0xff] %vm695, %v684
      %697 = vst.msk [vmem:[#allocation2 + $0x8] sm:$0xff] %vm695, %v686
      %698 = vst.msk [vmem:[#allocation2 + $0x10] sm:$0xff] %vm695, %v688
      %699 = vst.msk [vmem:[#allocation2 + $0x18] sm:$0xff] %vm695, %v690
      %v700 = vld [vmem:[#allocation2] sm:$0xff]
      %v701 = vld [vmem:[#allocation2 + $0x8] sm:$0xff]
      %v702 = vld [vmem:[#allocation2 + $0x10] sm:$0xff]
      %v703 = vld [vmem:[#allocation2 + $0x18] sm:$0xff]
      %v704 = vmax.f32 %v340, %v670
      %v705 = vmax.f32 %v345, %v671
      %v706 = vmax.f32 %v350, %v672
      %v707 = vmax.f32 %v355, %v673
      %v708 = vmax.f32 %v704, %v700
      %v709 = vmax.f32 %v705, %v701
      %v710 = vmax.f32 %v706, %v702
      %v711 = vmax.f32 %v707, %v703
      %vm712 = vcmask 31744
      %713 = vst.msk [vmem:[%s143] sm:$0xff] %vm712, %v708
      %714 = vst.msk [vmem:[%s143 + $0x8] sm:$0xff] %vm712, %v709
      %715 = vst.msk [vmem:[%s143 + $0x10] sm:$0xff] %vm712, %v710
      %716 = vst.msk [vmem:[%s143 + $0x18] sm:$0xff] %vm712, %v711
      %p717 = scmp.lt.s32.totalorder %s13, 1
      %s718 = scalar_select %p717, %s13, 1
      %s719 = smul.addr %s718, 4
      %s720 = smul.addr %s719, 8
      %s721 = scalar_lea.vmem %s2, %s720
      // Predicated region
      $region29: #{tpu_custom_call.1} parent=27 // pred_check
        %p722 = pneg %p78
      $region30: #{tpu_custom_call.1} parent=27 // pred_check_branch
        %724 = sbr.rel (%p722) target = $region32
      $region31: #{tpu_custom_call.1} parent=27 // pred_region
        _
      $region32: #{tpu_custom_call.1} parent=27 // pred_fallthru
        _
    $region28: #{tpu_custom_call.1} parent=5 // pred_fallthru
      _
    %p725 = scmp.le.s32.totalorder 2, %s8
    // Predicated region
    $region33: #{tpu_custom_call.1} parent=5 // pred_check
      %p726 = pneg %p725
    $region34: #{tpu_custom_call.1} parent=5 // pred_check_branch
      %728 = sbr.rel (%p726) target = $region36
    $region35: #{tpu_custom_call.1} parent=5 // pred_region
      %s729 = ssub.s32 %s8, 2
      // Predicated region
      $region37: #{tpu_custom_call.1} parent=35 // pred_check
        %p730 = pneg %p84
      $region38: #{tpu_custom_call.1} parent=35 // pred_check_branch
        %732 = sbr.rel (%p730) target = $region40
      $region39: #{tpu_custom_call.1} parent=35 // pred_region
        %p733 = scmp.lt.s32.totalorder %s14, 1
        %s734 = scalar_select %p733, %s14, 1
        %s735 = smul.addr %s734, 4
        %s736 = smul.addr %s735, 8
        %s737 = scalar_lea.vmem %s2, %s736
      $region40: #{tpu_custom_call.1} parent=35 // pred_fallthru
        _
    $region36: #{tpu_custom_call.1} parent=5 // pred_fallthru
      _
  $region6: #{tpu_custom_call.1} parent=0 // loop_footer
    %s12 = sadd.s32 1, %s8
  $region7: #{tpu_custom_call.1} parent=0 // loop_footer_branch
    %7 = sbr.rel target = $region3
  $region8: #{tpu_custom_call.1} parent=0 // loop_exit
    _

</llo_original>
